<compile_context>
chip_gen: v5e
topology: v5e:2x2
jax: 0.10.0
libtpu: 0.0.40
codegen_flags: <defaults>
</compile_context>

<pallas_src>
import jax
import jax.numpy as jnp
from jax.experimental import pallas as pl
from jax.experimental.pallas import tpu as pltpu


def _ffc_kernel(xr_ref, w_ref, b_ref, o_ref):
    # Single fused MXU matmul (K = num_inputs + R*M), f32 accumulation,
    # then bias + relu epilogue on the VPU in f32.
    h = jnp.dot(xr_ref[...], w_ref[...], preferred_element_type=jnp.float32)
    h = h + b_ref[...]                      # (1, H) broadcast over batch rows
    o_ref[...] = jnp.maximum(h, 0.0).astype(o_ref.dtype)


def prepare_ffc_params(w_in, b_in, w_rd, b_rd):
    """One-time parameter prep, hoisted out of the per-timestep path.

    PyTorch Linear stores weight as (out, in); the kernel wants (in, out).
    The two linears are fused into one matmul over the concatenated feature
    axis, and the two biases are pre-summed.
    """
    w_fused = jnp.concatenate(
        [jnp.transpose(w_in), jnp.transpose(w_rd)], axis=0
    ).astype(jnp.float32)                                        # (ni + R*M, H)
    b_fused = (b_in + b_rd).reshape(1, -1).astype(jnp.float32)   # (1, H)
    return w_fused, b_fused


@jax.jit
def feedforward_controller(x, read, w_fused, b_fused):
    """x: any shape with leading batch dim; read: (B, R, M) or (B, R*M), R == 1."""
    B = x.shape[0]
    if read.ndim == 3:
        # forward is only consistent with PyTorch's read.view(-1, M) when R == 1
        assert read.shape[1] == 1, "FeedForwardController forward requires num_read_heads == 1"

    x2 = x.reshape(B, -1).astype(jnp.float32)          # (B, num_inputs)
    read2 = read.reshape(B, -1).astype(jnp.float32)    # (B, R*M)
    xr = jnp.concatenate([x2, read2], axis=1)          # (B, ni + R*M)
    assert xr.shape[1] == w_fused.shape[0], "activation / fused-weight K mismatch"
    H = b_fused.shape[-1]

    vmem = pl.BlockSpec(memory_space=pltpu.MemorySpace.VMEM)

    return pl.pallas_call(
        _ffc_kernel,
        out_shape=jax.ShapeDtypeStruct((B, H), jnp.float32),
        in_specs=[vmem, vmem, vmem],
        out_specs=vmem,
    )(xr, w_fused, b_fused)


def _ref_forward(x, read, w_in, b_in, w_rd, b_rd):
    B = x.shape[0]
    x2 = x.reshape(B, -1)
    r2 = read.reshape(B, -1)
    h = x2 @ w_in.T + b_in + r2 @ w_rd.T + b_rd
    return jnp.maximum(h, 0.0)


if __name__ == "__main__":
    # Small, module-consistent shapes.
    batch_size = 8
    num_inputs = 32
    num_hidden = 32
    num_read_heads = 1            # forward only consistent for R == 1 (read.view(-1, M))
    memory_dims = (128, 20)
    M = memory_dims[1]

    key = jax.random.PRNGKey(0)
    k1, k2, k3, k4, k5, k6 = jax.random.split(key, 6)

    # Deterministic parameter init (PyTorch-Linear-style uniform ranges).
    bound_in = 1.0 / jnp.sqrt(num_inputs)
    bound_rd = 1.0 / jnp.sqrt(num_read_heads * M)
    w_in = jax.random.uniform(k1, (num_hidden, num_inputs), jnp.float32, -bound_in, bound_in)
    b_in = jax.random.uniform(k2, (num_hidden,), jnp.float32, -bound_in, bound_in)
    w_rd = jax.random.uniform(k3, (num_hidden, num_read_heads * M), jnp.float32, -bound_rd, bound_rd)
    b_rd = jax.random.uniform(k4, (num_hidden,), jnp.float32, -bound_rd, bound_rd)

    # Inputs: x arrives with extra dims and gets flattened (num_flat_features).
    x = jax.random.normal(k5, (batch_size, 4, 8), jnp.float32)      # flattens to (8, 32)
    read = jax.random.normal(k6, (batch_size, num_read_heads, M), jnp.float32)

    # One-time parameter prep (hoisted off the per-timestep path).
    w_fused, b_fused = prepare_ffc_params(w_in, b_in, w_rd, b_rd)
    w_fused = jax.block_until_ready(w_fused)

    out = feedforward_controller(x, read, w_fused, b_fused)
    out = jax.block_until_ready(out)

    ref = _ref_forward(x, read, w_in, b_in, w_rd, b_rd)
    assert out.shape == (batch_size, num_hidden)
    assert jnp.allclose(out, ref, atol=1e-5, rtol=1e-5), "mismatch vs reference"
    print("KERNEL_OK")
</pallas_src>

<mosaic_0001>
module attributes {stable_mosaic.version = 11 : i64} {
  func.func @_ffc_kernel(%arg0: memref<8x52xf32, #tpu.memory_space<vmem>>, %arg1: memref<52x32xf32, #tpu.memory_space<vmem>>, %arg2: memref<1x32xf32, #tpu.memory_space<vmem>>, %arg3: memref<8x32xf32, #tpu.memory_space<vmem>>) attributes {dimension_semantics = [], scalar_prefetch = 0 : i64, scratch_operands = 0 : i64, tpu.core_type = #tpu.core_type<tc>} {
    %c0 = arith.constant 0 : index
    %c0_0 = arith.constant 0 : index
    %0 = vector.load %arg0[%c0, %c0_0] : memref<8x52xf32, #tpu.memory_space<vmem>>, vector<8x52xf32>
    %c0_1 = arith.constant 0 : index
    %c0_2 = arith.constant 0 : index
    %1 = vector.load %arg1[%c0_1, %c0_2] : memref<52x32xf32, #tpu.memory_space<vmem>>, vector<52x32xf32>
    %cst = arith.constant dense<0.000000e+00> : vector<8x32xf32>
    %2 = tpu.matmul %0, %1, %cst {dimension_numbers = #tpu.dot_dimension_numbers<[1], [0], [0], [1], [0, 0, 1, 1], [], []>} : vector<8x52xf32>, vector<52x32xf32>, vector<8x32xf32> -> vector<8x32xf32>
    %c0_3 = arith.constant 0 : index
    %c0_4 = arith.constant 0 : index
    %3 = vector.load %arg2[%c0_3, %c0_4] : memref<1x32xf32, #tpu.memory_space<vmem>>, vector<1x32xf32>
    %4 = vector.broadcast %3 : vector<1x32xf32> to vector<8x32xf32>
    %5 = arith.addf %2, %4 : vector<8x32xf32>
    %cst_5 = arith.constant 0.000000e+00 : f32
    %6 = vector.broadcast %cst_5 : f32 to vector<8x32xf32>
    %7 = arith.maximumf %5, %6 : vector<8x32xf32>
    %c0_6 = arith.constant 0 : index
    %c0_7 = arith.constant 0 : index
    %8 = vector.load %arg3[%c0_6, %c0_7] : memref<8x32xf32, #tpu.memory_space<vmem>>, vector<8x32xf32>
    tpu.vector_store %arg3[%c0_6, %c0_7], %7 {strides = array<i32>} : memref<8x32xf32, #tpu.memory_space<vmem>>, vector<8x32xf32>,
    return
  }
}

</mosaic_0001>

<llo_original>
// kernel: feedforward_controller.1
$region0: #{feedforward_controller.1}
  #allocation0 [shape = 'u32[]', space=smem, size = 0x4, offset = 0x4, fixed_abs, tag = 'smem constant byte address 0x4 - core index']
  #allocation1 [shape = 'u32[72,128]{1,0:T(1,128)}', space=vmem, size = 0x9000, scoped, tag = 'internal scratch']
  %s0 = inlined_call_operand.vmem [shape: f32[8,52], index: 0, kind: input, shape index: {}]
  %s1 = inlined_call_operand.vmem [shape: f32[52,32], index: 1, kind: input, shape index: {}]
  %s2 = inlined_call_operand.vmem [shape: f32[1,32], index: 2, kind: input, shape index: {}]
  %s3 = inlined_call_operand.hbm [shape: f32[8,32], index: 3, kind: output, shape index: {}]
  %s4 = sld [smem:[#allocation0]]
  $region22: #{feedforward_controller.1} parent=0
    _
  %s6 = ssub.s32 1, %s4
  %s7 = scalar_select 0, %s6, %s4
  $region1: #{feedforward_controller.1} parent=0
    #allocation2 [shape = 'u8[4096]{0}', space=vmem, size = 0x1000, scoped, tag = 'output window, operand 0, single buffered']
    #allocation3 [shape = 's32[1]{0}', space=sflag, size = 0x4, scoped, tag = 'scoped memory for feedforward_controller.1']
    %8 = vsyncpa [#allocation3], 0
    // Predicated region
    $region2: #{feedforward_controller.1} parent=1 // pred_check
      _
    $region3: #{feedforward_controller.1} parent=1 // pred_check_branch
      %10 = sbr.rel (0) target = $region5
    $region4: #{feedforward_controller.1} parent=1 // pred_region
      _
    $region5: #{feedforward_controller.1} parent=1 // pred_fallthru
      _
    // Predicated region
    $region6: #{feedforward_controller.1} parent=1 // pred_check
      _
    $region7: #{feedforward_controller.1} parent=1 // pred_check_branch
      %12 = sbr.rel (0) target = $region9
    $region8: #{feedforward_controller.1} parent=1 // pred_region
      _
    $region9: #{feedforward_controller.1} parent=1 // pred_fallthru
      _
    // Predicated region
    $region10: #{feedforward_controller.1} parent=1 // pred_check
      _
    $region11: #{feedforward_controller.1} parent=1 // pred_check_branch
      %14 = sbr.rel (0) target = $region13
    $region12: #{feedforward_controller.1} parent=1 // pred_region
      _
    $region13: #{feedforward_controller.1} parent=1 // pred_fallthru
      _
    %v15 = vld [vmem:[%s0] sm:$0xff]
    %v16 = vld [vmem:[%s1] sm:$0xff]
    %v17 = vld [vmem:[%s1 + $0x8] sm:$0xff]
    %v18 = vld [vmem:[%s1 + $0x10] sm:$0xff]
    %v19 = vld [vmem:[%s1 + $0x18] sm:$0xff]
    %v20 = vld [vmem:[%s1 + $0x20] sm:$0xff]
    %v21 = vld [vmem:[%s1 + $0x28] sm:$0xff]
    %v22 = vld [vmem:[%s1 + $0x30] sm:$0xf]
    %v23 = vld [vmem:[%s2] sm:$0x1]
    %v25 = vperm.slane %v23, 0
    %vm27 = vcmask 424960
    %v29 = vsel %vm27, %v15, 0
    %vm31 = vcmask 1043456
    %v33 = vsel %vm31, %v22, 0
    %35 = vmatpush.msra.mxu0 0.0
    %36 = vmatpush.msra.mxu0 0.0
    %37 = vmatpush.msra.mxu0 0.0
    %38 = vmatpush.msra.mxu0 0.0
    %39 = vmatpush.msra.mxu0 0.0
    %40 = vmatpush.msra.mxu0 0.0
    %41 = vmatpush.msra.mxu0 0.0
    %42 = vmatpush.msra.mxu0 0.0
    %43 = vmatpush.msra.mxu0 0.0
    %44 = vmatpush.msra.mxu0 %v33
    %45 = vmatpush.msra.mxu0 %v21
    %46 = vmatpush.msra.mxu0 %v20
    %47 = vmatpush.msra.mxu0 %v19
    %48 = vmatpush.msra.mxu0 %v18
    %49 = vmatpush.msra.mxu0 %v17
    %50 = vmatpush.msra.mxu0 %v16
    %51 = vmatmul.f32.gmra.mxu0 %v29
    %v52 = vpop.f32.mrf.mxu0
    %v53 = vadd.f32 %v25, %v52
    %54 = vdwg.mxu0
    %v55 = vmax.f32 %v53, 0.0
    %vm56 = vcmask 261120
    %57 = vst.msk [vmem:[#allocation2] sm:$0xff] %vm56, %v55
    // Predicated region
    $region14: #{feedforward_controller.1} parent=1 // pred_check
      _
    $region15: #{feedforward_controller.1} parent=1 // pred_check_branch
      %59 = sbr.rel (0) target = $region17
    $region16: #{feedforward_controller.1} parent=1 // pred_region
      %61 = vsyncadd [#allocation3], 0
      %s63 = sshll.u32 [#allocation2], 4
      %s64 = int_to_ptr.vmem [resolvable:$true] %s63
      %s65 = sshll.u32 %s3, 4
      %s66 = int_to_ptr.hbm [resolvable:$true] %s65
      %68 = dma.vmem_to_hbm [thread:$0]  %s64, 128, %s66, [#allocation3]
    $region17: #{feedforward_controller.1} parent=1 // pred_fallthru
      _
    // Predicated region
    $region18: #{feedforward_controller.1} parent=1 // pred_check
      _
    $region19: #{feedforward_controller.1} parent=1 // pred_check_branch
      %70 = sbr.rel (0) target = $region21
    $region20: #{feedforward_controller.1} parent=1 // pred_region
      %72 = dma.done [#allocation3], 128
    $region21: #{feedforward_controller.1} parent=1 // pred_fallthru
      _
    %73 = vsyncpa [#allocation3], 1

</llo_original>
